<compile_context>
chip_gen: v7x
topology: tpu7x:2x2x1
jax: 0.10.0
libtpu: 0.0.40
codegen_flags: <defaults>
</compile_context>

<pallas_src>
import math
import functools

import jax
import jax.numpy as jnp
from jax.experimental import pallas as pl
from jax.experimental.pallas import tpu as pltpu

NEG_INF = -1e30                     # additive mask value (== -inf after row-max subtraction)
VMEM_LIMIT = 64 * 1024 * 1024       # explicit scoped-VMEM cap with headroom (v5e default is 16 MiB)


def _cp(*sems):
    return pltpu.CompilerParams(dimension_semantics=sems, vmem_limit_bytes=VMEM_LIMIT)


# ----------------------------------------------------------------------------
# Tile-size helpers (respect the TPU (8, 128) block constraint)
# ----------------------------------------------------------------------------
def _tile(dim, target, align):
    """Tile for a non-contraction axis. Partial final blocks are masked on write."""
    if dim <= target:
        return dim                       # full extent is always legal
    return max(align, (target // align) * align)


def _tile_exact(dim, target, align):
    """Tile that must divide `dim` exactly (contraction / KV axes)."""
    if dim <= target:
        return dim
    t = (target // align) * align
    while t >= align:
        if dim % t == 0:
            return t
        t -= align
    return dim


# ----------------------------------------------------------------------------
# Linear: y = x @ w + b, tiled over (rows, out-cols, contraction) with f32 accumulator
# ----------------------------------------------------------------------------
def _linear_kernel(x_ref, w_ref, b_ref, o_ref, acc_ref):
    @pl.when(pl.program_id(2) == 0)
    def _():
        acc_ref[...] = jnp.zeros_like(acc_ref)

    acc_ref[...] += jnp.dot(x_ref[...].astype(jnp.bfloat16), w_ref[...],
                            preferred_element_type=jnp.float32)

    @pl.when(pl.program_id(2) == pl.num_programs(2) - 1)
    def _():
        o_ref[...] = (acc_ref[...] + b_ref[...]).astype(o_ref.dtype)


def linear(x, w, b, out_dtype=jnp.bfloat16, tm=256, tn=512, tk=512):
    """x:[M,K] @ w:[K,N] (bf16) + b:[N] -> [M,N]."""
    M, K = x.shape
    N = w.shape[1]
    TM = _tile(M, tm, 8)
    TN = _tile(N, tn, 128)
    TK = _tile_exact(K, tk, 128)
    return pl.pallas_call(
        _linear_kernel,
        out_shape=jax.ShapeDtypeStruct((M, N), out_dtype),
        grid=(pl.cdiv(M, TM), pl.cdiv(N, TN), K // TK),
        in_specs=[
            pl.BlockSpec((TM, TK), lambda i, j, k: (i, k)),
            pl.BlockSpec((TK, TN), lambda i, j, k: (k, j)),
            pl.BlockSpec((1, TN), lambda i, j, k: (0, j)),
        ],
        out_specs=pl.BlockSpec((TM, TN), lambda i, j, k: (i, j)),
        scratch_shapes=[pltpu.VMEM((TM, TN), jnp.float32)],
        compiler_params=_cp("parallel", "parallel", "arbitrary"),
    )(x, w, b.reshape(1, N))


# ----------------------------------------------------------------------------
# Linear with fused residual-add + LayerNorm epilogue:  out = LN(res + x @ w + b)
# (used for the attention out-projection; output width == E so LN sees full rows)
# ----------------------------------------------------------------------------
def _linear_res_ln_kernel(x_ref, w_ref, b_ref, r_ref, g_ref, bt_ref, o_ref, acc_ref, *, eps):
    @pl.when(pl.program_id(1) == 0)
    def _():
        acc_ref[...] = jnp.zeros_like(acc_ref)

    acc_ref[...] += jnp.dot(x_ref[...].astype(jnp.bfloat16), w_ref[...],
                            preferred_element_type=jnp.float32)

    @pl.when(pl.program_id(1) == pl.num_programs(1) - 1)
    def _():
        y = acc_ref[...] + b_ref[...] + r_ref[...].astype(jnp.float32)
        mu = jnp.mean(y, axis=-1, keepdims=True)
        yc = y - mu
        var = jnp.mean(yc * yc, axis=-1, keepdims=True)
        o_ref[...] = (yc * jax.lax.rsqrt(var + eps) * g_ref[...]
                      + bt_ref[...]).astype(o_ref.dtype)


def linear_res_ln(x, w, b, res, gamma, beta, eps=1e-5, tm=256, tk=512):
    M, K = x.shape
    N = w.shape[1]
    TM = _tile(M, tm, 8)
    TK = _tile_exact(K, tk, 128)
    return pl.pallas_call(
        functools.partial(_linear_res_ln_kernel, eps=eps),
        out_shape=jax.ShapeDtypeStruct((M, N), jnp.bfloat16),
        grid=(pl.cdiv(M, TM), K // TK),
        in_specs=[
            pl.BlockSpec((TM, TK), lambda i, k: (i, k)),
            pl.BlockSpec((TK, N), lambda i, k: (k, 0)),
            pl.BlockSpec((1, N), lambda i, k: (0, 0)),
            pl.BlockSpec((TM, N), lambda i, k: (i, 0)),
            pl.BlockSpec((1, N), lambda i, k: (0, 0)),
            pl.BlockSpec((1, N), lambda i, k: (0, 0)),
        ],
        out_specs=pl.BlockSpec((TM, N), lambda i, k: (i, 0)),
        scratch_shapes=[pltpu.VMEM((TM, N), jnp.float32)],
        compiler_params=_cp("parallel", "arbitrary"),
    )(x, w, b.reshape(1, N), res, gamma.reshape(1, N), beta.reshape(1, N))


# ----------------------------------------------------------------------------
# FFN with fused residual-add + LayerNorm:  out = LN(res + relu(x@w1+b1)@w2 + b2)
# ----------------------------------------------------------------------------
def _ffn_res_ln_kernel(x_ref, w1_ref, b1_ref, w2_ref, b2_ref, r_ref, g_ref, bt_ref,
                       o_ref, acc_ref, *, eps):
    @pl.when(pl.program_id(1) == 0)
    def _():
        acc_ref[...] = jnp.zeros_like(acc_ref)

    x = x_ref[...].astype(jnp.bfloat16)
    h = jnp.dot(x, w1_ref[...], preferred_element_type=jnp.float32) + b1_ref[...]
    h = jnp.maximum(h, 0.0).astype(jnp.bfloat16)
    acc_ref[...] += jnp.dot(h, w2_ref[...], preferred_element_type=jnp.float32)

    @pl.when(pl.program_id(1) == pl.num_programs(1) - 1)
    def _():
        y = acc_ref[...] + b2_ref[...] + r_ref[...].astype(jnp.float32)
        mu = jnp.mean(y, axis=-1, keepdims=True)
        yc = y - mu
        var = jnp.mean(yc * yc, axis=-1, keepdims=True)
        o_ref[...] = (yc * jax.lax.rsqrt(var + eps) * g_ref[...]
                      + bt_ref[...]).astype(o_ref.dtype)


def ffn_res_ln(x, w1, b1, w2, b2, res, gamma, beta, eps=1e-5, tm=256, tf=512):
    M, E = x.shape
    F = w1.shape[1]
    TM = _tile(M, tm, 8)
    TF = _tile_exact(F, tf, 128)
    return pl.pallas_call(
        functools.partial(_ffn_res_ln_kernel, eps=eps),
        out_shape=jax.ShapeDtypeStruct((M, E), jnp.bfloat16),
        grid=(pl.cdiv(M, TM), F // TF),
        in_specs=[
            pl.BlockSpec((TM, E), lambda i, f: (i, 0)),
            pl.BlockSpec((E, TF), lambda i, f: (0, f)),
            pl.BlockSpec((1, TF), lambda i, f: (0, f)),
            pl.BlockSpec((TF, E), lambda i, f: (f, 0)),
            pl.BlockSpec((1, E), lambda i, f: (0, 0)),
            pl.BlockSpec((TM, E), lambda i, f: (i, 0)),
            pl.BlockSpec((1, E), lambda i, f: (0, 0)),
            pl.BlockSpec((1, E), lambda i, f: (0, 0)),
        ],
        out_specs=pl.BlockSpec((TM, E), lambda i, f: (i, 0)),
        scratch_shapes=[pltpu.VMEM((TM, E), jnp.float32)],
        compiler_params=_cp("parallel", "arbitrary"),
    )(x, w1, b1.reshape(1, F), w2, b2.reshape(1, E), res,
      gamma.reshape(1, E), beta.reshape(1, E))


# ----------------------------------------------------------------------------
# Flash-style attention: grid (B, H, kv_tiles), online softmax, in-kernel causal mask
# ----------------------------------------------------------------------------
def _attn_kernel(q_ref, k_ref, v_ref, o_ref, m_sc, l_sc, acc_sc, *, scale, causal, tkv):
    kv_i = pl.program_id(2)

    @pl.when(kv_i == 0)
    def _():
        m_sc[...] = jnp.full_like(m_sc, -jnp.inf)
        l_sc[...] = jnp.zeros_like(l_sc)
        acc_sc[...] = jnp.zeros_like(acc_sc)

    q = q_ref[0, 0]                                            # [T,   dh] bf16
    k = k_ref[0, 0]                                            # [TKV, dh] bf16
    s = jax.lax.dot_general(q, k, (((1,), (1,)), ((), ())),
                            preferred_element_type=jnp.float32) * scale   # [T, TKV] f32
    if causal:
        t = q.shape[0]
        qpos = jax.lax.broadcasted_iota(jnp.int32, (t, tkv), 0)
        kpos = jax.lax.broadcasted_iota(jnp.int32, (t, tkv), 1) + kv_i * tkv
        s = jnp.where(kpos > qpos, NEG_INF, s)

    m_prev = m_sc[...]
    m_new = jnp.maximum(m_prev, jnp.max(s, axis=-1, keepdims=True))
    alpha = jnp.exp(m_prev - m_new)
    p = jnp.exp(s - m_new)
    l_sc[...] = alpha * l_sc[...] + jnp.sum(p, axis=-1, keepdims=True)
    acc_sc[...] = alpha * acc_sc[...] + jnp.dot(p.astype(jnp.bfloat16), v_ref[0, 0],
                                                preferred_element_type=jnp.float32)
    m_sc[...] = m_new

    @pl.when(kv_i == pl.num_programs(2) - 1)
    def _():
        inv = pl.reciprocal(l_sc[...], approx=True)
        o_ref[0, 0] = (acc_sc[...] * inv).astype(o_ref.dtype)


def attention_core(q, k, v, *, causal, tkv_target=512):
    """q:[B,H,T,dh], k/v:[B,H,S,dh] (bf16) -> [B,H,T,dh] bf16."""
    B, H, T, dh = q.shape
    S = k.shape[2]
    TKV = _tile_exact(S, tkv_target, 8)
    scale = 1.0 / math.sqrt(dh)
    return pl.pallas_call(
        functools.partial(_attn_kernel, scale=scale, causal=causal, tkv=TKV),
        out_shape=jax.ShapeDtypeStruct((B, H, T, dh), jnp.bfloat16),
        grid=(B, H, S // TKV),
        in_specs=[
            pl.BlockSpec((1, 1, T, dh), lambda b, h, kv: (b, h, 0, 0)),
            pl.BlockSpec((1, 1, TKV, dh), lambda b, h, kv: (b, h, kv, 0)),
            pl.BlockSpec((1, 1, TKV, dh), lambda b, h, kv: (b, h, kv, 0)),
        ],
        out_specs=pl.BlockSpec((1, 1, T, dh), lambda b, h, kv: (b, h, 0, 0)),
        scratch_shapes=[pltpu.VMEM((T, 1), jnp.float32),
                        pltpu.VMEM((T, 1), jnp.float32),
                        pltpu.VMEM((T, dh), jnp.float32)],
        compiler_params=_cp("parallel", "parallel", "arbitrary"),
    )(q, k, v)


# ----------------------------------------------------------------------------
# Model glue (plain JAX): head splitting, layer stacking
# ----------------------------------------------------------------------------
def mha_self(x, p, B, T, H):
    E = x.shape[1]
    dh = E // H
    qkv = linear(x, p["qkv_w"], p["qkv_b"], out_dtype=jnp.bfloat16)       # [B*T, 3E]
    qkv = jnp.transpose(qkv.reshape(B, T, 3, H, dh), (2, 0, 3, 1, 4))     # [3,B,H,T,dh]
    o = attention_core(qkv[0], qkv[1], qkv[2], causal=True)               # [B,H,T,dh]
    return jnp.transpose(o, (0, 2, 1, 3)).reshape(B * T, E)               # [B*T, E] bf16


def mha_cross(x, mem, p, B, T, S, H):
    E = x.shape[1]
    dh = E // H
    q = linear(x, p["q_w"], p["q_b"], out_dtype=jnp.bfloat16)             # [B*T, E]
    kv = linear(mem, p["kv_w"], p["kv_b"], out_dtype=jnp.bfloat16)        # [B*S, 2E]
    q = jnp.transpose(q.reshape(B, T, H, dh), (0, 2, 1, 3))               # [B,H,T,dh]
    kv = jnp.transpose(kv.reshape(B, S, 2, H, dh), (2, 0, 3, 1, 4))       # [2,B,H,S,dh]
    o = attention_core(q, kv[0], kv[1], causal=False)
    return jnp.transpose(o, (0, 2, 1, 3)).reshape(B * T, E)


def decoder_layer(x, mem, p, B, T, S, H):
    # nn.TransformerDecoderLayer, norm_first=False (post-LN), relu, dropout=identity.
    sa = mha_self(x, p["self_attn"], B, T, H)
    x = linear_res_ln(sa, p["self_attn"]["out_w"], p["self_attn"]["out_b"],
                      x, p["ln1_g"], p["ln1_b"])
    ca = mha_cross(x, mem, p["cross_attn"], B, T, S, H)
    x = linear_res_ln(ca, p["cross_attn"]["out_w"], p["cross_attn"]["out_b"],
                      x, p["ln2_g"], p["ln2_b"])
    x = ffn_res_ln(x, p["w1"], p["b1"], p["w2"], p["b2"], x, p["ln3_g"], p["ln3_b"])
    return x


def transformer_decoder_forward(params, dec_in, enc_out, num_heads):
    T, B = dec_in.shape
    S, _, E = enc_out.shape
    # Embedding lookup + positional embedding (gather is glue, done in XLA).
    emb = jnp.take(params["embedding"], dec_in, axis=0) + params["pos_emb"][:T]   # [T,B,E] f32
    # Batch-major bf16 activation stream.
    x = jnp.transpose(emb, (1, 0, 2)).reshape(B * T, E).astype(jnp.bfloat16)
    mem = jnp.transpose(enc_out, (1, 0, 2)).reshape(B * S, E).astype(jnp.bfloat16)
    for lp in params["layers"]:
        x = decoder_layer(x, mem, lp, B, T, S, num_heads)
    logits = linear(x, params["fc_w"], params["fc_b"], out_dtype=jnp.float32)     # [B*T, V]
    V = params["fc_w"].shape[1]
    return jnp.transpose(logits.reshape(B, T, V), (1, 0, 2))                      # [T, B, V]


# ----------------------------------------------------------------------------
# Deterministic parameter construction (weights pre-transposed [Din,Dout], bf16)
# ----------------------------------------------------------------------------
def create_positional_embedding(max_len, d):
    pos = jnp.arange(max_len, dtype=jnp.float32)[:, None]
    div = jnp.exp(jnp.arange(0, d, 2, dtype=jnp.float32) * (-math.log(10000.0) / d))
    pe = jnp.zeros((max_len, d), jnp.float32)
    pe = pe.at[:, 0::2].set(jnp.sin(pos * div))
    pe = pe.at[:, 1::2].set(jnp.cos(pos * div))
    return pe[:, None, :]  # [max_len, 1, d]


def init_params(key, vocab, E, num_layers, F, max_len):
    keys = iter(jax.random.split(key, 8 + 16 * num_layers))

    def u(shape, fan_in, dtype=jnp.float32):
        s = 1.0 / math.sqrt(fan_in)
        return jax.random.uniform(next(keys), shape, jnp.float32, -s, s).astype(dtype)

    params = {
        "embedding": jax.random.normal(next(keys), (vocab, E), jnp.float32),
        "pos_emb": create_positional_embedding(max_len, E),
        "fc_w": u((E, vocab), E, jnp.bfloat16),     # pre-transposed [Din, Dout]
        "fc_b": u((vocab,), E),
        "layers": [],
    }
    for _ in range(num_layers):
        lp = {
            "self_attn": {
                "qkv_w": u((E, 3 * E), E, jnp.bfloat16),
                "qkv_b": jnp.zeros((3 * E,), jnp.float32),
                "out_w": u((E, E), E, jnp.bfloat16),
                "out_b": jnp.zeros((E,), jnp.float32),
            },
            "cross_attn": {
                "q_w": u((E, E), E, jnp.bfloat16),
                "q_b": jnp.zeros((E,), jnp.float32),
                "kv_w": u((E, 2 * E), E, jnp.bfloat16),
                "kv_b": jnp.zeros((2 * E,), jnp.float32),
                "out_w": u((E, E), E, jnp.bfloat16),
                "out_b": jnp.zeros((E,), jnp.float32),
            },
            "ln1_g": jnp.ones((E,), jnp.float32), "ln1_b": jnp.zeros((E,), jnp.float32),
            "ln2_g": jnp.ones((E,), jnp.float32), "ln2_b": jnp.zeros((E,), jnp.float32),
            "ln3_g": jnp.ones((E,), jnp.float32), "ln3_b": jnp.zeros((E,), jnp.float32),
            "w1": u((E, F), E, jnp.bfloat16), "b1": u((F,), E),
            "w2": u((F, E), F, jnp.bfloat16), "b2": u((E,), F),
        }
        params["layers"].append(lp)
    return params


# ----------------------------------------------------------------------------
if __name__ == "__main__":
    T, B, E, HEADS, LAYERS, FF = 8, 2, 32, 4, 2, 64
    VOCAB, MAX_LEN_TRG, S_ENC = 50, 16, 16

    key = jax.random.PRNGKey(0)
    k_param, k_tok, k_enc = jax.random.split(key, 3)

    params = init_params(k_param, VOCAB, E, LAYERS, FF, MAX_LEN_TRG)
    dec_in = jax.random.randint(k_tok, (T, B), 0, VOCAB, dtype=jnp.int32)   # [seq, batch]
    enc_out = jax.random.normal(k_enc, (S_ENC, B, E), dtype=jnp.float32)    # [max_len, batch, embed]

    out = transformer_decoder_forward(params, dec_in, enc_out, HEADS)
    out = jax.block_until_ready(out)

    assert out.shape == (T, B, VOCAB), out.shape
    assert bool(jnp.all(jnp.isfinite(out)))
    print("KERNEL_OK")
</pallas_src>

<mosaic_0001>
module attributes {stable_mosaic.version = 11 : i64} {
  func.func @_linear_kernel(%arg0: i32, %arg1: i32, %arg2: i32, %arg3: memref<16x32xbf16, #tpu.memory_space<vmem>>, %arg4: memref<32x96xbf16, #tpu.memory_space<vmem>>, %arg5: memref<1x96xf32, #tpu.memory_space<vmem>>, %arg6: memref<16x96xbf16, #tpu.memory_space<vmem>>, %arg7: memref<16x96xf32, #tpu.memory_space<vmem>>) attributes {dimension_semantics = [#tpu.dimension_semantics<parallel>, #tpu.dimension_semantics<parallel>, #tpu.dimension_semantics<arbitrary>], iteration_bounds = array<i64: 1, 1, 1>, scalar_prefetch = 0 : i64, scratch_operands = 1 : i64, tpu.core_type = #tpu.core_type<tc>, window_params = [{transform_indices = @transform_0, window_bounds = array<i64: 16, 32>}, {transform_indices = @transform_1, window_bounds = array<i64: 32, 96>}, {transform_indices = @transform_2, window_bounds = array<i64: 1, 96>}, {transform_indices = @transform_3, window_bounds = array<i64: 16, 96>}]} {
    %c0_i32 = arith.constant 0 : i32
    %0 = arith.cmpi eq, %arg2, %c0_i32 : i32
    %1 = arith.extui %0 : i1 to i32
    %c0_i32_0 = arith.constant 0 : i32
    %2 = arith.cmpi ne, %1, %c0_i32_0 : i32
    scf.if %2 {
      %cst_10 = arith.constant 0.000000e+00 : f32
      %12 = vector.broadcast %cst_10 : f32 to vector<16x96xf32>
      %c0_11 = arith.constant 0 : index
      %c0_12 = arith.constant 0 : index
      %13 = vector.load %arg7[%c0_11, %c0_12] : memref<16x96xf32, #tpu.memory_space<vmem>>, vector<16x96xf32>
      tpu.vector_store %arg7[%c0_11, %c0_12], %12 {strides = array<i32>} : memref<16x96xf32, #tpu.memory_space<vmem>>, vector<16x96xf32>,
    } else {
    }
    %c0 = arith.constant 0 : index
    %c0_1 = arith.constant 0 : index
    %3 = vector.load %arg7[%c0, %c0_1] : memref<16x96xf32, #tpu.memory_space<vmem>>, vector<16x96xf32>
    %c0_2 = arith.constant 0 : index
    %c0_3 = arith.constant 0 : index
    %4 = vector.load %arg3[%c0_2, %c0_3] : memref<16x32xbf16, #tpu.memory_space<vmem>>, vector<16x32xbf16>
    %c0_4 = arith.constant 0 : index
    %c0_5 = arith.constant 0 : index
    %5 = vector.load %arg4[%c0_4, %c0_5] : memref<32x96xbf16, #tpu.memory_space<vmem>>, vector<32x96xbf16>
    %cst = arith.constant dense<0.000000e+00> : vector<16x96xf32>
    %6 = tpu.matmul %4, %5, %cst {dimension_numbers = #tpu.dot_dimension_numbers<[1], [0], [0], [1], [0, 0, 1, 1], [], []>} : vector<16x32xbf16>, vector<32x96xbf16>, vector<16x96xf32> -> vector<16x96xf32>
    %7 = arith.addf %3, %6 : vector<16x96xf32>
    %c0_6 = arith.constant 0 : index
    %c0_7 = arith.constant 0 : index
    %8 = vector.load %arg7[%c0_6, %c0_7] : memref<16x96xf32, #tpu.memory_space<vmem>>, vector<16x96xf32>
    tpu.vector_store %arg7[%c0_6, %c0_7], %7 {strides = array<i32>} : memref<16x96xf32, #tpu.memory_space<vmem>>, vector<16x96xf32>,
    %c0_i32_8 = arith.constant 0 : i32
    %9 = arith.cmpi eq, %arg2, %c0_i32_8 : i32
    %10 = arith.extui %9 : i1 to i32
    %c0_i32_9 = arith.constant 0 : i32
    %11 = arith.cmpi ne, %10, %c0_i32_9 : i32
    scf.if %11 {
      %c0_10 = arith.constant 0 : index
      %c0_11 = arith.constant 0 : index
      %12 = vector.load %arg7[%c0_10, %c0_11] : memref<16x96xf32, #tpu.memory_space<vmem>>, vector<16x96xf32>
      %c0_12 = arith.constant 0 : index
      %c0_13 = arith.constant 0 : index
      %13 = vector.load %arg5[%c0_12, %c0_13] : memref<1x96xf32, #tpu.memory_space<vmem>>, vector<1x96xf32>
      %14 = vector.broadcast %13 : vector<1x96xf32> to vector<16x96xf32>
      %15 = arith.addf %12, %14 : vector<16x96xf32>
      %16 = arith.truncf %15 : vector<16x96xf32> to vector<16x96xbf16>
      %c0_14 = arith.constant 0 : index
      %c0_15 = arith.constant 0 : index
      %17 = vector.load %arg6[%c0_14, %c0_15] : memref<16x96xbf16, #tpu.memory_space<vmem>>, vector<16x96xbf16>
      tpu.vector_store %arg6[%c0_14, %c0_15], %16 {strides = array<i32>} : memref<16x96xbf16, #tpu.memory_space<vmem>>, vector<16x96xbf16>,
    } else {
    }
    return
  }
  func.func @transform_0(%arg0: i32, %arg1: i32, %arg2: i32) -> (i32, i32) {
    %c0_i32 = arith.constant 0 : i32
    return %arg0, %arg2 : i32, i32
  }
  func.func @transform_1(%arg0: i32, %arg1: i32, %arg2: i32) -> (i32, i32) {
    %c0_i32 = arith.constant 0 : i32
    return %arg2, %arg1 : i32, i32
  }
  func.func @transform_2(%arg0: i32, %arg1: i32, %arg2: i32) -> (i32, i32) {
    %c0_i32 = arith.constant 0 : i32
    %c0_i32_0 = arith.constant 0 : i32
    return %c0_i32, %arg1 : i32, i32
  }
  func.func @transform_3(%arg0: i32, %arg1: i32, %arg2: i32) -> (i32, i32) {
    %c0_i32 = arith.constant 0 : i32
    return %arg0, %arg1 : i32, i32
  }
}

</mosaic_0001>

<llo_original>
// kernel: tpu_custom_call.1
$region0: #{tpu_custom_call.1}
  #allocation0 [shape = 'u32[]', space=smem, size = 0x4, offset = 0x4, fixed_abs, tag = 'smem constant byte address 0x4 - core index']
  #allocation1 [shape = 'u32[144,128]{1,0:T(1,128)}', space=vmem, size = 0x12000, scoped, tag = 'internal scratch']
  #allocation2 [shape = 'f32[16,96]{1,0:T(8,128)}', space=vmem, size = 0x2000, scoped, tag = 'scratch operand']
  %s0 = inlined_call_operand.hbm [shape: bf16[16,32], index: 0, kind: input, shape index: {}]
  %s1 = inlined_call_operand.hbm [shape: bf16[32,96], index: 1, kind: input, shape index: {}]
  %s2 = inlined_call_operand.hbm [shape: f32[1,96], index: 2, kind: input, shape index: {}]
  %s3 = inlined_call_operand.hbm [shape: bf16[16,96], index: 3, kind: output, shape index: {}]
  %s4 = sld [smem:[#allocation0]]
  $region42: #{tpu_custom_call.1} parent=0
    _
  %s6 = ssub.s32 1, %s4
  %s7 = scalar_select 0, %s6, %s4
  $region1: #{tpu_custom_call.1} parent=0
    #allocation3 [shape = 'u8[4096]{0}', space=vmem, size = 0x1000, scoped, tag = 'input window, operand 0, single buffered']
    #allocation4 [shape = 's32[1]{0}', space=sflag, size = 0x4, scoped, tag = 'scoped memory for tpu_custom_call.1']
    #allocation5 [shape = 's32[1]{0}', space=sflag, size = 0x4, scoped, tag = 'scoped memory for tpu_custom_call.1']
    #allocation6 [shape = 'u8[8192]{0}', space=vmem, size = 0x2000, scoped, tag = 'input window, operand 1, single buffered']
    #allocation7 [shape = 's32[1]{0}', space=sflag, size = 0x4, scoped, tag = 'scoped memory for tpu_custom_call.1']
    #allocation8 [shape = 'u8[512]{0}', space=vmem, size = 0x400, scoped, tag = 'input window, operand 2, single buffered']
    #allocation9 [shape = 'u8[4096]{0}', space=vmem, size = 0x1000, scoped, tag = 'output window, operand 0, single buffered']
    %8 = vsyncpa [#allocation4], 0
    %9 = vsyncpa [#allocation7], 0
    %10 = vsyncpa [#allocation5], 0
    // Predicated region
    $region2: #{tpu_custom_call.1} parent=1 // pred_check
      _
    $region3: #{tpu_custom_call.1} parent=1 // pred_check_branch
      %12 = sbr.rel (0) target = $region5
    $region4: #{tpu_custom_call.1} parent=1 // pred_region
      %s14 = ssub.s32 128, 128
      %15 = vsyncadd [#allocation4], %s14
      %s16 = sshll.u32 [#allocation3], 4
      %s17 = int_to_ptr.vmem [resolvable:$true] %s16
      %22 = dma.hbm_to_vmem [thread:$0]  %s0, 128, %s17, [#allocation4], 64, 64, 4
    $region5: #{tpu_custom_call.1} parent=1 // pred_fallthru
      _
    // Predicated region
    $region6: #{tpu_custom_call.1} parent=1 // pred_check
      _
    $region7: #{tpu_custom_call.1} parent=1 // pred_check_branch
      %24 = sbr.rel (0) target = $region9
    $region8: #{tpu_custom_call.1} parent=1 // pred_region
      %s26 = ssub.s32 256, 256
      %27 = vsyncadd [#allocation7], %s26
      %s28 = sshll.u32 [#allocation6], 4
      %s29 = int_to_ptr.vmem [resolvable:$true] %s28
      %34 = dma.hbm_to_vmem [thread:$0]  %s1, 256, %s29, [#allocation7], 64, 64, 4
    $region9: #{tpu_custom_call.1} parent=1 // pred_fallthru
      _
    // Predicated region
    $region10: #{tpu_custom_call.1} parent=1 // pred_check
      _
    $region11: #{tpu_custom_call.1} parent=1 // pred_check_branch
      %36 = sbr.rel (0) target = $region13
    $region12: #{tpu_custom_call.1} parent=1 // pred_region
      %s38 = ssub.s32 16, 16
      %39 = vsyncadd [#allocation7], %s38
      %s41 = sshll.u32 [#allocation8], 4
      %s42 = int_to_ptr.vmem [resolvable:$true] %s41
      %44 = dma.hbm_to_vmem [thread:$0]  %s2, 16, %s42, [#allocation7]
    $region13: #{tpu_custom_call.1} parent=1 // pred_fallthru
      _
    // Predicated region
    $region14: #{tpu_custom_call.1} parent=1 // pred_check
      _
    $region15: #{tpu_custom_call.1} parent=1 // pred_check_branch
      %46 = sbr.rel (0) target = $region17
    $region16: #{tpu_custom_call.1} parent=1 // pred_region
      %47 = dma.done [#allocation4], 128
    $region17: #{tpu_custom_call.1} parent=1 // pred_fallthru
      _
    // Predicated region
    $region18: #{tpu_custom_call.1} parent=1 // pred_check
      _
    $region19: #{tpu_custom_call.1} parent=1 // pred_check_branch
      %49 = sbr.rel (0) target = $region21
    $region20: #{tpu_custom_call.1} parent=1 // pred_region
      %50 = dma.done [#allocation7], 256
    $region21: #{tpu_custom_call.1} parent=1 // pred_fallthru
      _
    // Predicated region
    $region22: #{tpu_custom_call.1} parent=1 // pred_check
      _
    $region23: #{tpu_custom_call.1} parent=1 // pred_check_branch
      %52 = sbr.rel (0) target = $region25
    $region24: #{tpu_custom_call.1} parent=1 // pred_region
      %53 = dma.done [#allocation7], 16
    $region25: #{tpu_custom_call.1} parent=1 // pred_fallthru
      _
    %p55 = scmp.eq.s32.totalorder 0, 0
    // Predicated region
    $region26: #{tpu_custom_call.1} parent=1 // pred_check
      %p56 = pneg %p55
    $region27: #{tpu_custom_call.1} parent=1 // pred_check_branch
      %58 = sbr.rel (%p56) target = $region29
    $region28: #{tpu_custom_call.1} parent=1 // pred_region
      %vm59 = vcmask 785408
      %60 = vst.msk [vmem:[#allocation2] sm:$0xff] %vm59, 0.0
      %61 = vst.msk [vmem:[#allocation2 + $0x8] sm:$0xff] %vm59, 0.0
    $region29: #{tpu_custom_call.1} parent=1 // pred_fallthru
      _
    %v62 = vld [vmem:[#allocation2] sm:$0xff]
    %v63 = vld [vmem:[#allocation2 + $0x8] sm:$0xff]
    %v64 = vld [vmem:[#allocation3] sm:$0xf]
    %v65 = vld [vmem:[#allocation3 + $0x4] sm:$0xf]
    %v66 = vld [vmem:[#allocation6] sm:$0xf]
    %v67 = vld [vmem:[#allocation6 + $0x4] sm:$0xf]
    %v68 = vld [vmem:[#allocation6 + $0x8] sm:$0xf]
    %v69 = vld [vmem:[#allocation6 + $0xc] sm:$0xf]
    %v72 = vunpack.c.l.b16 %v64
    %v73 = vunpack.c.l.b16 %v65
    %v74 = vpack.c.b16 %v73, %v72
    %v79 = vunpack.c.l.b16 %v66
    %v80 = vunpack.c.l.b16 %v67
    %v81 = vunpack.c.l.b16 %v68
    %v82 = vunpack.c.l.b16 %v69
    %v83 = vpack.c.b16 %v80, %v79
    %v84 = vpack.c.b16 %v82, %v81
    %vm87 = vcmask 261120
    %v89 = vsel %vm87, %v74, 0
    %91 = vmatprep.subr.bf16.mxu0 0
    %92 = vmatpush1.bf16.msra.mxu0 %v83
    %93 = vmatprep.subr.bf16.mxu0 0
    %94 = vmatpush1.bf16.msra.mxu0 %v84
    %95 = vmatprep.subr.bf16.mxu0 0
    %96 = vmatpush1.bf16.msra.mxu0 0
    %97 = vmatprep.subr.bf16.mxu0 0
    %98 = vmatpush1.bf16.msra.mxu0 0
    %99 = vmatprep.subr.bf16.mxu0 0
    %100 = vmatpush1.bf16.msra.mxu0 0
    %101 = vmatprep.subr.bf16.mxu0 0
    %102 = vmatpush1.bf16.msra.mxu0 0
    %103 = vmatprep.subr.bf16.mxu0 0
    %104 = vmatpush1.bf16.msra.mxu0 0
    %105 = vmatprep.subr.bf16.mxu0 0
    %106 = vmatpush1.bf16.msra.mxu0 0
    %107 = vmatprep.subr.bf16.mxu0 0
    %108 = vmatpush1.bf16.msra.mxu0 0
    %109 = vmatprep.subr.bf16.mxu0 0
    %110 = vmatpush1.bf16.msra.mxu0 0
    %111 = vmatprep.subr.bf16.mxu0 0
    %112 = vmatpush1.bf16.msra.mxu0 0
    %113 = vmatprep.subr.bf16.mxu0 0
    %114 = vmatpush1.bf16.msra.mxu0 0
    %115 = vmatprep.subr.bf16.mxu0 0
    %116 = vmatpush1.bf16.msra.mxu0 0
    %117 = vmatprep.subr.bf16.mxu0 0
    %118 = vmatpush1.bf16.msra.mxu0 0
    %119 = vmatprep.subr.bf16.mxu0 0
    %120 = vmatpush1.bf16.msra.mxu0 0
    %121 = vmatprep.subr.bf16.mxu0 0
    %122 = vmatpush1.bf16.msra.mxu0 0
    %123 = vmatprep.mubr.bf16.mxu0 0
    %124 = vmatmul.mubr.bf16.gmra.mrb[0].mxu0 %v89
    %v125 = vpop.f32.mrb[0].mxu0
    %v126 = vadd.f32 0.0, %v125
    %v127 = vpop.f32.mrb[0].mxu0
    %v128 = vpop.f32.mrb[0].mxu0
    %v129 = vadd.f32 0.0, %v128
    %v130 = vpop.f32.mrb[0].mxu0
    %131 = vdwg.mxu0
    %v132 = vadd.f32 %v62, %v126
    %v133 = vadd.f32 %v63, %v129
    %vm134 = vcmask 785408
    %135 = vst.msk [vmem:[#allocation2] sm:$0xff] %vm134, %v132
    %136 = vst.msk [vmem:[#allocation2 + $0x8] sm:$0xff] %vm134, %v133
    // Predicated region
    $region30: #{tpu_custom_call.1} parent=1 // pred_check
      %p137 = pneg %p55
    $region31: #{tpu_custom_call.1} parent=1 // pred_check_branch
      %139 = sbr.rel (%p137) target = $region33
    $region32: #{tpu_custom_call.1} parent=1 // pred_region
      %v140 = vld [vmem:[#allocation2] sm:$0xff]
      %v141 = vld [vmem:[#allocation2 + $0x8] sm:$0xff]
      %v142 = vld [vmem:[#allocation8] sm:$0x1]
      %v144 = vlaneseq
      %v145 = vshrl.u32 %v144, 7
      %v146 = vsub.s32 0, %v145
      %v147 = vrot.slane %v142, %v146
      %v149 = vadd.f32 %v140, %v147
      %v150 = vadd.f32 %v141, %v147
      %v151 = vpack.c.bf16 %v150, %v149
      %v153 = vunpack.c.l.b16 %v151
      %v154 = vunpack.c.h.b16 %v151
      %v155 = vpack.c.b16 %v153, %v153
      %v156 = vpack.c.b16 %v154, %v154
      %vm159 = vcmask 781312
      %160 = vst.msk [vmem:[#allocation9] sm:$0xf] %vm159, %v155
      %161 = vst.msk [vmem:[#allocation9 + $0x4] sm:$0xf] %vm159, %v156
    $region33: #{tpu_custom_call.1} parent=1 // pred_fallthru
      _
    // Predicated region
    $region34: #{tpu_custom_call.1} parent=1 // pred_check
      _
    $region35: #{tpu_custom_call.1} parent=1 // pred_check_branch
      %163 = sbr.rel (0) target = $region37
    $region36: #{tpu_custom_call.1} parent=1 // pred_region
      %s165 = ssub.s32 128, 128
      %166 = vsyncadd [#allocation5], %s165
      %s167 = sshll.u32 [#allocation9], 4
      %s168 = int_to_ptr.vmem [resolvable:$true] %s167
      %173 = dma.vmem_to_hbm [thread:$0]  %s168, 128, %s3, [#allocation5], 64, 64, 4
    $region37: #{tpu_custom_call.1} parent=1 // pred_fallthru
      _
    // Predicated region
    $region38: #{tpu_custom_call.1} parent=1 // pred_check
      _
    $region39: #{tpu_custom_call.1} parent=1 // pred_check_branch
      %175 = sbr.rel (0) target = $region41
    $region40: #{tpu_custom_call.1} parent=1 // pred_region
      %176 = dma.done [#allocation5], 128
    $region41: #{tpu_custom_call.1} parent=1 // pred_fallthru
      _
    %177 = vsyncpa [#allocation4], 1
    %178 = vsyncpa [#allocation7], 1
    %179 = vsyncpa [#allocation5], 1

</llo_original>
